<compile_context>
chip_gen: v5e
topology: v5e:2x2
jax: 0.10.0
libtpu: 0.0.40
codegen_flags: <defaults>
</compile_context>

<pallas_src>
import numpy as np
import jax
import jax.numpy as jnp
from jax.experimental import pallas as pl
from jax.experimental.pallas import tpu as pltpu


# ----------------------------------------------------------------------------
# Pallas kernel (single invocation, whole batch)
# ----------------------------------------------------------------------------
def unet_up_kernel(wbig_ref, xf_ref, kfold_ref, skip_ref, out_ref):
    # wbig_ref : VMEM (N*Cout, 9*N*Cin)  tap-major, batch-block-diagonal conv weight
    # xf_ref   : VMEM (N*Cin, H*W)       input, batch+channel rows, spatial flattened
    # kfold_ref: VMEM (H*W, 9*P)         folded upsample + zero-pad + 3x3 window matrix
    # skip_ref : VMEM (N, Cs, P)         skip connection, spatial flattened
    # out_ref  : VMEM (N, Cout+Cs, P)    [conv->IN->ReLU | skip] fused output
    N, Cs, P = skip_ref.shape
    Cout = out_ref.shape[1] - Cs

    # GEMM 1: bilinear x2 upsample + zero-pad + all nine 3x3 shifted windows for
    # every (batch, channel) row in a single MXU matmul.
    # m2[n*Cin + c, t*P + p] = tap-t-shifted, zero-padded, upsampled x[n, c] at pixel p.
    m2 = jnp.dot(xf_ref[...], kfold_ref[...],
                 preferred_element_type=jnp.float32)               # (N*Cin, 9*P)

    # Tap-major restack: each tap slice is a 128-lane-aligned (N*Cin, P) block,
    # so this is pure sublane-tile stacking (no shuffles / relayout work).
    # m3 row index = t*(N*Cin) + n*Cin + c  — matches wbig's column layout.
    m3 = jnp.concatenate([m2[:, t * P:(t + 1) * P] for t in range(9)],
                         axis=0)                                   # (9*N*Cin, P)

    # GEMM 2: whole 3x3 conv (all taps, all channels, all batches) as ONE MXU
    # contraction with K = 9*N*Cin.  Conv bias intentionally omitted: it is
    # cancelled exactly by the affine-free InstanceNorm that follows.
    acc = jnp.dot(wbig_ref[...], m3,
                  preferred_element_type=jnp.float32)              # (N*Cout, P)

    # Fused InstanceNorm (biased variance, eps=1e-5, no affine) + ReLU.
    inv_p = 1.0 / P
    mean = jnp.sum(acc, axis=1, keepdims=True) * inv_p             # (N*Cout, 1)
    var = jnp.sum(acc * acc, axis=1, keepdims=True) * inv_p - mean * mean
    var = jnp.maximum(var, 0.0)
    y = jnp.maximum((acc - mean) * jax.lax.rsqrt(var + 1e-5), 0.0)

    # Fused channel concat: conv output first, then skip (torch.cat((x, skip), 1)).
    # Cout and Cs are multiples of 8, P multiple of 128 -> aligned, unmasked stores.
    for n in range(N):
        out_ref[n, :Cout, :] = y[n * Cout:(n + 1) * Cout, :].astype(out_ref.dtype)
        out_ref[n, Cout:, :] = skip_ref[n].astype(out_ref.dtype)


# ----------------------------------------------------------------------------
# Wrapper: full module forward in one pallas_call (no grid)
# ----------------------------------------------------------------------------
def unet_up(x, skip, w4, kfold):
    N, Cin, H, W = x.shape
    Cout = w4.shape[0]
    Cs = skip.shape[1]
    H2, W2 = 2 * H, 2 * W
    HW, P = H * W, H2 * W2
    assert kfold.shape == (HW, 9 * P)
    assert skip.shape == (N, Cs, H2, W2)

    xf = x.reshape(N * Cin, HW)                     # free XLA reshape
    skipf = skip.reshape(N, Cs, P)

    # Tap-major, batch-block-diagonal flattened conv weight:
    # wbig[n*Cout + o, t*(N*Cin) + n*Cin + c] = w4[o, c, t//3, t%3]
    w_t = w4.transpose(2, 3, 0, 1).reshape(9, Cout, Cin)
    eye = jnp.eye(N, dtype=w4.dtype)
    wbig = jnp.concatenate([jnp.kron(eye, w_t[t]) for t in range(9)], axis=1)

    cost = pl.CostEstimate(
        flops=(2 * (N * Cin) * HW * (9 * P)
               + 2 * (N * Cout) * (9 * N * Cin) * P
               + 8 * (N * Cout) * P),
        transcendentals=N * Cout,
        bytes_accessed=4 * (wbig.size + xf.size + kfold.size + skipf.size
                            + N * (Cout + Cs) * P),
    )

    vmem = pl.BlockSpec(memory_space=pltpu.MemorySpace.VMEM)
    y = pl.pallas_call(
        unet_up_kernel,
        out_shape=jax.ShapeDtypeStruct((N, Cout + Cs, P), x.dtype),
        in_specs=[vmem, vmem, vmem, vmem],
        out_specs=vmem,
        compiler_params=pltpu.CompilerParams(vmem_limit_bytes=64 * 1024 * 1024),
        cost_estimate=cost,
    )(wbig, xf, kfold, skipf)

    return y.reshape(N, Cout + Cs, H2, W2)


# ----------------------------------------------------------------------------
# Host-side constant construction
# ----------------------------------------------------------------------------
def interp_matrix(n_out, n_in):
    """1D bilinear interpolation matrix, align_corners=True (PyTorch semantics)."""
    if n_in == 1:
        return np.ones((n_out, n_in), np.float32)
    src = np.arange(n_out, dtype=np.float64) * (n_in - 1) / (n_out - 1)
    lo = np.clip(np.floor(src).astype(np.int64), 0, n_in - 2)
    frac = src - lo
    M = np.zeros((n_out, n_in), np.float64)
    M[np.arange(n_out), lo] += 1.0 - frac
    M[np.arange(n_out), lo + 1] += frac
    return M.astype(np.float32)


def _shift_rows(U, d):
    """V[i, :] = U[i + d, :] if in range else 0 (models conv zero padding)."""
    V = np.zeros_like(U)
    if d == 0:
        V[...] = U
    elif d > 0:
        V[:-d, :] = U[d:, :]
    else:
        V[-d:, :] = U[:d, :]
    return V


def build_fold_matrix(H, W):
    """K_fold (H*W, 9*H2*W2): folds bilinear x2 upsample (align_corners=True),
    zero padding (pad=1) and the nine 3x3 shifted-window extractions into one
    matrix, so x_flat @ K_fold yields every im2col row for every tap.
    Per-tap column blocks have width H2*W2 (multiple of 128 here -> aligned)."""
    H2, W2 = 2 * H, 2 * W
    uh = interp_matrix(H2, H).astype(np.float64)   # (H2, H)
    uw = interp_matrix(W2, W).astype(np.float64)   # (W2, W)
    cols = []
    for dy in range(3):
        uh_d = _shift_rows(uh, dy - 1)
        for dx in range(3):
            uw_d = _shift_rows(uw, dx - 1)
            k = np.kron(uh_d, uw_d)                # (H2*W2, H*W)
            cols.append(k.T)                       # (H*W, H2*W2)
    return np.concatenate(cols, axis=1).astype(np.float32)  # (H*W, 9*H2*W2)


# ----------------------------------------------------------------------------
# Pure-JAX reference (same math as the PyTorch module, conv bias included)
# ----------------------------------------------------------------------------
def ref_forward(x, skip, w4, b, uh, uw):
    xu = jnp.einsum('ih,nchw->nciw', uh, x)
    xu = jnp.einsum('jw,nciw->ncij', uw, xu)
    y = jax.lax.conv_general_dilated(
        xu, w4, window_strides=(1, 1), padding=((1, 1), (1, 1)),
        dimension_numbers=('NCHW', 'OIHW', 'NCHW'))
    y = y + b[None, :, None, None]
    m = jnp.mean(y, axis=(2, 3), keepdims=True)
    v = jnp.mean((y - m) ** 2, axis=(2, 3), keepdims=True)
    y = jnp.maximum((y - m) * jax.lax.rsqrt(v + 1e-5), 0.0)
    return jnp.concatenate([y, skip], axis=1)


# ----------------------------------------------------------------------------
# Main
# ----------------------------------------------------------------------------
if __name__ == "__main__":
    # UNetUp(in_channels=4, out_channels=8); input 8x8 -> upsampled 16x16,
    # skip has out_channels channels at the upsampled resolution.
    # dropout=0.0 (module default) -> no Dropout layer is instantiated.
    N, Cin, H, W = 2, 4, 8, 8
    Cout, Cs = 8, 8
    H2, W2 = 2 * H, 2 * W

    key = jax.random.PRNGKey(0)
    k1, k2, k3, k4 = jax.random.split(key, 4)
    x = jax.random.normal(k1, (N, Cin, H, W), jnp.float32)
    skip = jax.random.normal(k2, (N, Cs, H2, W2), jnp.float32)
    w4 = jax.random.normal(k3, (Cout, Cin, 3, 3), jnp.float32) * 0.1
    b = jax.random.normal(k4, (Cout,), jnp.float32) * 0.1   # reference only; cancelled by IN

    kfold = jnp.asarray(build_fold_matrix(H, W))             # (64, 9*256)

    out = unet_up(x, skip, w4, kfold)
    out = jax.block_until_ready(out)
    assert out.shape == (N, Cout + Cs, H2, W2), out.shape

    uh = jnp.asarray(interp_matrix(H2, H))                   # (2H, H)
    uw = jnp.asarray(interp_matrix(W2, W))                   # (2W, W)
    ref = jax.block_until_ready(ref_forward(x, skip, w4, b, uh, uw))
    np.testing.assert_allclose(np.asarray(out), np.asarray(ref),
                               atol=2e-3, rtol=2e-3)

    print("KERNEL_OK")
</pallas_src>

<mosaic_0001>
module attributes {stable_mosaic.version = 11 : i64} {
  func.func @unet_up_kernel(%arg0: memref<16x72xf32, #tpu.memory_space<vmem>>, %arg1: memref<8x64xf32, #tpu.memory_space<vmem>>, %arg2: memref<64x2304xf32, #tpu.memory_space<vmem>>, %arg3: memref<2x8x256xf32, #tpu.memory_space<vmem>>, %arg4: memref<2x16x256xf32, #tpu.memory_space<vmem>>) attributes {dimension_semantics = [], scalar_prefetch = 0 : i64, scratch_operands = 0 : i64, tpu.core_type = #tpu.core_type<tc>} {
    %c0 = arith.constant 0 : index
    %c0_0 = arith.constant 0 : index
    %0 = vector.load %arg1[%c0, %c0_0] : memref<8x64xf32, #tpu.memory_space<vmem>>, vector<8x64xf32>
    %c0_1 = arith.constant 0 : index
    %c0_2 = arith.constant 0 : index
    %1 = vector.load %arg2[%c0_1, %c0_2] : memref<64x2304xf32, #tpu.memory_space<vmem>>, vector<64x2304xf32>
    %cst = arith.constant dense<0.000000e+00> : vector<8x2304xf32>
    %2 = tpu.matmul %0, %1, %cst {dimension_numbers = #tpu.dot_dimension_numbers<[1], [0], [0], [1], [0, 0, 1, 1], [], []>} : vector<8x64xf32>, vector<64x2304xf32>, vector<8x2304xf32> -> vector<8x2304xf32>
    %3 = vector.extract_strided_slice %2 {offsets = [0, 0], sizes = [8, 256], strides = [1, 1]} : vector<8x2304xf32> to vector<8x256xf32>
    %4 = vector.extract_strided_slice %2 {offsets = [0, 256], sizes = [8, 256], strides = [1, 1]} : vector<8x2304xf32> to vector<8x256xf32>
    %5 = vector.extract_strided_slice %2 {offsets = [0, 512], sizes = [8, 256], strides = [1, 1]} : vector<8x2304xf32> to vector<8x256xf32>
    %6 = vector.extract_strided_slice %2 {offsets = [0, 768], sizes = [8, 256], strides = [1, 1]} : vector<8x2304xf32> to vector<8x256xf32>
    %7 = vector.extract_strided_slice %2 {offsets = [0, 1024], sizes = [8, 256], strides = [1, 1]} : vector<8x2304xf32> to vector<8x256xf32>
    %8 = vector.extract_strided_slice %2 {offsets = [0, 1280], sizes = [8, 256], strides = [1, 1]} : vector<8x2304xf32> to vector<8x256xf32>
    %9 = vector.extract_strided_slice %2 {offsets = [0, 1536], sizes = [8, 256], strides = [1, 1]} : vector<8x2304xf32> to vector<8x256xf32>
    %10 = vector.extract_strided_slice %2 {offsets = [0, 1792], sizes = [8, 256], strides = [1, 1]} : vector<8x2304xf32> to vector<8x256xf32>
    %11 = vector.extract_strided_slice %2 {offsets = [0, 2048], sizes = [8, 256], strides = [1, 1]} : vector<8x2304xf32> to vector<8x256xf32>
    %12 = tpu.concatenate %3, %4, %5, %6, %7, %8, %9, %10, %11 in 0 : vector<8x256xf32>, vector<8x256xf32>, vector<8x256xf32>, vector<8x256xf32>, vector<8x256xf32>, vector<8x256xf32>, vector<8x256xf32>, vector<8x256xf32>, vector<8x256xf32> -> vector<72x256xf32>
    %c0_3 = arith.constant 0 : index
    %c0_4 = arith.constant 0 : index
    %13 = vector.load %arg0[%c0_3, %c0_4] : memref<16x72xf32, #tpu.memory_space<vmem>>, vector<16x72xf32>
    %cst_5 = arith.constant dense<0.000000e+00> : vector<16x256xf32>
    %14 = tpu.matmul %13, %12, %cst_5 {dimension_numbers = #tpu.dot_dimension_numbers<[1], [0], [0], [1], [0, 0, 1, 1], [], []>} : vector<16x72xf32>, vector<72x256xf32>, vector<16x256xf32> -> vector<16x256xf32>
    %cst_6 = arith.constant dense<0.000000e+00> : vector<16xf32>
    %15 = vector.multi_reduction <add>, %14, %cst_6 [1] : vector<16x256xf32> to vector<16xf32>
    %16 = vector.shape_cast %15 : vector<16xf32> to vector<16x1xf32>
    %cst_7 = arith.constant 3.906250e-03 : f32
    %17 = vector.broadcast %cst_7 : f32 to vector<16x1xf32>
    %18 = arith.mulf %16, %17 : vector<16x1xf32>
    %19 = arith.mulf %14, %14 : vector<16x256xf32>
    %cst_8 = arith.constant dense<0.000000e+00> : vector<16xf32>
    %20 = vector.multi_reduction <add>, %19, %cst_8 [1] : vector<16x256xf32> to vector<16xf32>
    %21 = vector.shape_cast %20 : vector<16xf32> to vector<16x1xf32>
    %cst_9 = arith.constant 3.906250e-03 : f32
    %22 = vector.broadcast %cst_9 : f32 to vector<16x1xf32>
    %23 = arith.mulf %21, %22 : vector<16x1xf32>
    %24 = arith.mulf %18, %18 : vector<16x1xf32>
    %25 = arith.subf %23, %24 : vector<16x1xf32>
    %cst_10 = arith.constant 0.000000e+00 : f32
    %26 = vector.broadcast %cst_10 : f32 to vector<16x1xf32>
    %27 = arith.maximumf %25, %26 : vector<16x1xf32>
    %28 = vector.broadcast %18 : vector<16x1xf32> to vector<16x256xf32>
    %29 = arith.subf %14, %28 : vector<16x256xf32>
    %cst_11 = arith.constant 9.99999974E-6 : f32
    %30 = vector.broadcast %cst_11 : f32 to vector<16x1xf32>
    %31 = arith.addf %27, %30 : vector<16x1xf32>
    %32 = math.rsqrt %31 : vector<16x1xf32>
    %33 = vector.broadcast %32 : vector<16x1xf32> to vector<16x256xf32>
    %34 = arith.mulf %29, %33 : vector<16x256xf32>
    %cst_12 = arith.constant 0.000000e+00 : f32
    %35 = vector.broadcast %cst_12 : f32 to vector<16x256xf32>
    %36 = arith.maximumf %34, %35 : vector<16x256xf32>
    %37 = vector.extract_strided_slice %36 {offsets = [0, 0], sizes = [8, 256], strides = [1, 1]} : vector<16x256xf32> to vector<8x256xf32>
    %c0_13 = arith.constant 0 : index
    %c0_14 = arith.constant 0 : index
    %c0_15 = arith.constant 0 : index
    %38 = vector.load %arg4[%c0_13, %c0_14, %c0_15] : memref<2x16x256xf32, #tpu.memory_space<vmem>>, vector<1x8x256xf32>
    %39 = vector.shape_cast %38 : vector<1x8x256xf32> to vector<8x256xf32>
    %40 = vector.shape_cast %37 : vector<8x256xf32> to vector<1x8x256xf32>
    tpu.vector_store %arg4[%c0_13, %c0_14, %c0_15], %40 {strides = array<i32>} : memref<2x16x256xf32, #tpu.memory_space<vmem>>, vector<1x8x256xf32>,
    %c0_16 = arith.constant 0 : index
    %c0_17 = arith.constant 0 : index
    %c0_18 = arith.constant 0 : index
    %41 = vector.load %arg3[%c0_16, %c0_17, %c0_18] : memref<2x8x256xf32, #tpu.memory_space<vmem>>, vector<1x8x256xf32>
    %42 = vector.shape_cast %41 : vector<1x8x256xf32> to vector<8x256xf32>
    %c0_19 = arith.constant 0 : index
    %c8 = arith.constant 8 : index
    %c0_20 = arith.constant 0 : index
    %43 = vector.load %arg4[%c0_19, %c8, %c0_20] : memref<2x16x256xf32, #tpu.memory_space<vmem>>, vector<1x8x256xf32>
    %44 = vector.shape_cast %43 : vector<1x8x256xf32> to vector<8x256xf32>
    %45 = vector.shape_cast %42 : vector<8x256xf32> to vector<1x8x256xf32>
    tpu.vector_store %arg4[%c0_19, %c8, %c0_20], %45 {strides = array<i32>} : memref<2x16x256xf32, #tpu.memory_space<vmem>>, vector<1x8x256xf32>,
    %46 = vector.extract_strided_slice %36 {offsets = [8, 0], sizes = [8, 256], strides = [1, 1]} : vector<16x256xf32> to vector<8x256xf32>
    %c1 = arith.constant 1 : index
    %c0_21 = arith.constant 0 : index
    %c0_22 = arith.constant 0 : index
    %47 = vector.load %arg4[%c1, %c0_21, %c0_22] : memref<2x16x256xf32, #tpu.memory_space<vmem>>, vector<1x8x256xf32>
    %48 = vector.shape_cast %47 : vector<1x8x256xf32> to vector<8x256xf32>
    %49 = vector.shape_cast %46 : vector<8x256xf32> to vector<1x8x256xf32>
    tpu.vector_store %arg4[%c1, %c0_21, %c0_22], %49 {strides = array<i32>} : memref<2x16x256xf32, #tpu.memory_space<vmem>>, vector<1x8x256xf32>,
    %c1_23 = arith.constant 1 : index
    %c0_24 = arith.constant 0 : index
    %c0_25 = arith.constant 0 : index
    %50 = vector.load %arg3[%c1_23, %c0_24, %c0_25] : memref<2x8x256xf32, #tpu.memory_space<vmem>>, vector<1x8x256xf32>
    %51 = vector.shape_cast %50 : vector<1x8x256xf32> to vector<8x256xf32>
    %c1_26 = arith.constant 1 : index
    %c8_27 = arith.constant 8 : index
    %c0_28 = arith.constant 0 : index
    %52 = vector.load %arg4[%c1_26, %c8_27, %c0_28] : memref<2x16x256xf32, #tpu.memory_space<vmem>>, vector<1x8x256xf32>
    %53 = vector.shape_cast %52 : vector<1x8x256xf32> to vector<8x256xf32>
    %54 = vector.shape_cast %51 : vector<8x256xf32> to vector<1x8x256xf32>
    tpu.vector_store %arg4[%c1_26, %c8_27, %c0_28], %54 {strides = array<i32>} : memref<2x16x256xf32, #tpu.memory_space<vmem>>, vector<1x8x256xf32>,
    return
  }
}

</mosaic_0001>

<llo_original>
// kernel: tpu_custom_call.1
$region0: #{tpu_custom_call.1}
  #allocation0 [shape = 'u32[]', space=smem, size = 0x4, offset = 0x4, fixed_abs, tag = 'smem constant byte address 0x4 - core index']
  #allocation1 [shape = 'u32[72,128]{1,0:T(1,128)}', space=vmem, size = 0x9000, scoped, tag = 'internal scratch']
  %s0 = inlined_call_operand.hbm [shape: f32[16,72], index: 0, kind: input, shape index: {}]
  %s1 = inlined_call_operand.hbm [shape: f32[8,64], index: 1, kind: input, shape index: {}]
  %s2 = inlined_call_operand.hbm [shape: f32[64,2304], index: 2, kind: input, shape index: {}]
  %s3 = inlined_call_operand.hbm [shape: f32[2,8,256], index: 3, kind: input, shape index: {}]
  %s4 = inlined_call_operand.hbm [shape: f32[2,16,256], index: 4, kind: output, shape index: {}]
  %s5 = sld [smem:[#allocation0]]
  $region42: #{tpu_custom_call.1} parent=0
    _
  %s7 = ssub.s32 1, %s5
  %s8 = scalar_select 0, %s7, %s5
  $region1: #{tpu_custom_call.1} parent=0
    #allocation2 [shape = 'u8[8192]{0}', space=vmem, size = 0x2000, scoped, tag = 'input window, operand 0, single buffered']
    #allocation3 [shape = 's32[1]{0}', space=sflag, size = 0x4, scoped, tag = 'scoped memory for tpu_custom_call.1']
    #allocation4 [shape = 's32[1]{0}', space=sflag, size = 0x4, scoped, tag = 'scoped memory for tpu_custom_call.1']
    #allocation5 [shape = 'u8[4096]{0}', space=vmem, size = 0x1000, scoped, tag = 'input window, operand 1, single buffered']
    #allocation6 [shape = 's32[1]{0}', space=sflag, size = 0x4, scoped, tag = 'scoped memory for tpu_custom_call.1']
    #allocation7 [shape = 'u8[589824]{0}', space=vmem, size = 0x90000, scoped, tag = 'input window, operand 2, single buffered']
    #allocation8 [shape = 'u8[16384]{0}', space=vmem, size = 0x4000, scoped, tag = 'input window, operand 3, single buffered']
    #allocation9 [shape = 's32[1]{0}', space=sflag, size = 0x4, scoped, tag = 'scoped memory for tpu_custom_call.1']
    #allocation10 [shape = 'u8[32768]{0}', space=vmem, size = 0x8000, scoped, tag = 'output window, operand 0, single buffered']
    %9 = vsyncpa [#allocation3], 0
    %10 = vsyncpa [#allocation6], 0
    %11 = vsyncpa [#allocation9], 0
    %12 = vsyncpa [#allocation4], 0
    // Predicated region
    $region2: #{tpu_custom_call.1} parent=1 // pred_check
      _
    $region3: #{tpu_custom_call.1} parent=1 // pred_check_branch
      %14 = sbr.rel (0) target = $region5
    $region4: #{tpu_custom_call.1} parent=1 // pred_region
      %16 = vsyncadd [#allocation3], 0
      %s17 = sshll.u32 %s0, 4
      %s18 = int_to_ptr.hbm [resolvable:$true] %s17
      %s19 = sshll.u32 [#allocation2], 4
      %s20 = int_to_ptr.vmem [resolvable:$true] %s19
      %25 = dma.hbm_to_vmem [thread:$0]  %s18, 256, %s20, [#allocation3], 128, 128, 8
    $region5: #{tpu_custom_call.1} parent=1 // pred_fallthru
      _
    // Predicated region
    $region6: #{tpu_custom_call.1} parent=1 // pred_check
      _
    $region7: #{tpu_custom_call.1} parent=1 // pred_check_branch
      %27 = sbr.rel (0) target = $region9
    $region8: #{tpu_custom_call.1} parent=1 // pred_region
      %29 = vsyncadd [#allocation6], 0
      %s31 = sshll.u32 %s1, 4
      %s32 = int_to_ptr.hbm [resolvable:$true] %s31
      %s33 = sshll.u32 [#allocation5], 4
      %s34 = int_to_ptr.vmem [resolvable:$true] %s33
      %36 = dma.hbm_to_vmem [thread:$0]  %s32, 128, %s34, [#allocation6]
    $region9: #{tpu_custom_call.1} parent=1 // pred_fallthru
      _
    // Predicated region
    $region10: #{tpu_custom_call.1} parent=1 // pred_check
      _
    $region11: #{tpu_custom_call.1} parent=1 // pred_check_branch
      %38 = sbr.rel (0) target = $region13
    $region12: #{tpu_custom_call.1} parent=1 // pred_region
      %40 = vsyncadd [#allocation6], 0
      %s41 = sshll.u32 %s2, 4
      %s42 = int_to_ptr.hbm [resolvable:$true] %s41
      %s43 = sshll.u32 [#allocation7], 4
      %s44 = int_to_ptr.vmem [resolvable:$true] %s43
      %49 = dma.hbm_to_vmem [thread:$0]  %s42, 18432, %s44, [#allocation6], 2304, 2304, 144
    $region13: #{tpu_custom_call.1} parent=1 // pred_fallthru
      _
    // Predicated region
    $region14: #{tpu_custom_call.1} parent=1 // pred_check
      _
    $region15: #{tpu_custom_call.1} parent=1 // pred_check_branch
      %51 = sbr.rel (0) target = $region17
    $region16: #{tpu_custom_call.1} parent=1 // pred_region
      %53 = vsyncadd [#allocation9], 0
      %s54 = sshll.u32 %s3, 4
      %s55 = int_to_ptr.hbm [resolvable:$true] %s54
      %s56 = sshll.u32 [#allocation8], 4
      %s57 = int_to_ptr.vmem [resolvable:$true] %s56
      %62 = dma.hbm_to_vmem [thread:$0]  %s55, 512, %s57, [#allocation9], 256, 256, 16
    $region17: #{tpu_custom_call.1} parent=1 // pred_fallthru
      _
    // Predicated region
    $region18: #{tpu_custom_call.1} parent=1 // pred_check
      _
    $region19: #{tpu_custom_call.1} parent=1 // pred_check_branch
      %64 = sbr.rel (0) target = $region21
    $region20: #{tpu_custom_call.1} parent=1 // pred_region
      %66 = dma.done [#allocation3], 256
    $region21: #{tpu_custom_call.1} parent=1 // pred_fallthru
      _
    // Predicated region
    $region22: #{tpu_custom_call.1} parent=1 // pred_check
      _
    $region23: #{tpu_custom_call.1} parent=1 // pred_check_branch
      %68 = sbr.rel (0) target = $region25
    $region24: #{tpu_custom_call.1} parent=1 // pred_region
      %70 = dma.done [#allocation6], 128
    $region25: #{tpu_custom_call.1} parent=1 // pred_fallthru
      _
    // Predicated region
    $region26: #{tpu_custom_call.1} parent=1 // pred_check
      _
    $region27: #{tpu_custom_call.1} parent=1 // pred_check_branch
      %72 = sbr.rel (0) target = $region29
    $region28: #{tpu_custom_call.1} parent=1 // pred_region
      %74 = dma.done [#allocation6], 18432
    $region29: #{tpu_custom_call.1} parent=1 // pred_fallthru
      _
    // Predicated region
    $region30: #{tpu_custom_call.1} parent=1 // pred_check
      _
    $region31: #{tpu_custom_call.1} parent=1 // pred_check_branch
      %76 = sbr.rel (0) target = $region33
    $region32: #{tpu_custom_call.1} parent=1 // pred_region
      %78 = dma.done [#allocation9], 512
    $region33: #{tpu_custom_call.1} parent=1 // pred_fallthru
      _
    %v79 = vld [vmem:[#allocation5] sm:$0xff]
    %v80 = vld [vmem:[#allocation7] sm:$0xff]
    %v81 = vld [vmem:[#allocation7 + $0x8] sm:$0xff]
    %v82 = vld [vmem:[#allocation7 + $0x10] sm:$0xff]
    %v83 = vld [vmem:[#allocation7 + $0x18] sm:$0xff]
    %v84 = vld [vmem:[#allocation7 + $0x20] sm:$0xff]
    %v85 = vld [vmem:[#allocation7 + $0x28] sm:$0xff]
    %v86 = vld [vmem:[#allocation7 + $0x30] sm:$0xff]
    %v87 = vld [vmem:[#allocation7 + $0x38] sm:$0xff]
    %v88 = vld [vmem:[#allocation7 + $0x40] sm:$0xff]
    %v89 = vld [vmem:[#allocation7 + $0x48] sm:$0xff]
    %v90 = vld [vmem:[#allocation7 + $0x50] sm:$0xff]
    %v91 = vld [vmem:[#allocation7 + $0x58] sm:$0xff]
    %v92 = vld [vmem:[#allocation7 + $0x60] sm:$0xff]
    %v93 = vld [vmem:[#allocation7 + $0x68] sm:$0xff]
    %v94 = vld [vmem:[#allocation7 + $0x70] sm:$0xff]
    %v95 = vld [vmem:[#allocation7 + $0x78] sm:$0xff]
    %v96 = vld [vmem:[#allocation7 + $0x80] sm:$0xff]
    %v97 = vld [vmem:[#allocation7 + $0x88] sm:$0xff]
    %v98 = vld [vmem:[#allocation7 + $0x90] sm:$0xff]
    %v99 = vld [vmem:[#allocation7 + $0x98] sm:$0xff]
    %v100 = vld [vmem:[#allocation7 + $0xa0] sm:$0xff]
    %v101 = vld [vmem:[#allocation7 + $0xa8] sm:$0xff]
    %v102 = vld [vmem:[#allocation7 + $0xb0] sm:$0xff]
    %v103 = vld [vmem:[#allocation7 + $0xb8] sm:$0xff]
    %v104 = vld [vmem:[#allocation7 + $0xc0] sm:$0xff]
    %v105 = vld [vmem:[#allocation7 + $0xc8] sm:$0xff]
    %v106 = vld [vmem:[#allocation7 + $0xd0] sm:$0xff]
    %v107 = vld [vmem:[#allocation7 + $0xd8] sm:$0xff]
    %v108 = vld [vmem:[#allocation7 + $0xe0] sm:$0xff]
    %v109 = vld [vmem:[#allocation7 + $0xe8] sm:$0xff]
    %v110 = vld [vmem:[#allocation7 + $0xf0] sm:$0xff]
    %v111 = vld [vmem:[#allocation7 + $0xf8] sm:$0xff]
    %v112 = vld [vmem:[#allocation7 + $0x100] sm:$0xff]
    %v113 = vld [vmem:[#allocation7 + $0x108] sm:$0xff]
    %v114 = vld [vmem:[#allocation7 + $0x110] sm:$0xff]
    %v115 = vld [vmem:[#allocation7 + $0x118] sm:$0xff]
    %v116 = vld [vmem:[#allocation7 + $0x120] sm:$0xff]
    %v117 = vld [vmem:[#allocation7 + $0x128] sm:$0xff]
    %v118 = vld [vmem:[#allocation7 + $0x130] sm:$0xff]
    %v119 = vld [vmem:[#allocation7 + $0x138] sm:$0xff]
    %v120 = vld [vmem:[#allocation7 + $0x140] sm:$0xff]
    %v121 = vld [vmem:[#allocation7 + $0x148] sm:$0xff]
    %v122 = vld [vmem:[#allocation7 + $0x150] sm:$0xff]
    %v123 = vld [vmem:[#allocation7 + $0x158] sm:$0xff]
    %v124 = vld [vmem:[#allocation7 + $0x160] sm:$0xff]
    %v125 = vld [vmem:[#allocation7 + $0x168] sm:$0xff]
    %v126 = vld [vmem:[#allocation7 + $0x170] sm:$0xff]
    %v127 = vld [vmem:[#allocation7 + $0x178] sm:$0xff]
    %v128 = vld [vmem:[#allocation7 + $0x180] sm:$0xff]
    %v129 = vld [vmem:[#allocation7 + $0x188] sm:$0xff]
    %v130 = vld [vmem:[#allocation7 + $0x190] sm:$0xff]
    %v131 = vld [vmem:[#allocation7 + $0x198] sm:$0xff]
    %v132 = vld [vmem:[#allocation7 + $0x1a0] sm:$0xff]
    %v133 = vld [vmem:[#allocation7 + $0x1a8] sm:$0xff]
    %v134 = vld [vmem:[#allocation7 + $0x1b0] sm:$0xff]
    %v135 = vld [vmem:[#allocation7 + $0x1b8] sm:$0xff]
    %v136 = vld [vmem:[#allocation7 + $0x1c0] sm:$0xff]
    %v137 = vld [vmem:[#allocation7 + $0x1c8] sm:$0xff]
    %v138 = vld [vmem:[#allocation7 + $0x1d0] sm:$0xff]
    %v139 = vld [vmem:[#allocation7 + $0x1d8] sm:$0xff]
    %v140 = vld [vmem:[#allocation7 + $0x1e0] sm:$0xff]
    %v141 = vld [vmem:[#allocation7 + $0x1e8] sm:$0xff]
    %v142 = vld [vmem:[#allocation7 + $0x1f0] sm:$0xff]
    %v143 = vld [vmem:[#allocation7 + $0x1f8] sm:$0xff]
    %v144 = vld [vmem:[#allocation7 + $0x200] sm:$0xff]
    %v145 = vld [vmem:[#allocation7 + $0x208] sm:$0xff]
    %v146 = vld [vmem:[#allocation7 + $0x210] sm:$0xff]
    %v147 = vld [vmem:[#allocation7 + $0x218] sm:$0xff]
    %v148 = vld [vmem:[#allocation7 + $0x220] sm:$0xff]
    %v149 = vld [vmem:[#allocation7 + $0x228] sm:$0xff]
    %v150 = vld [vmem:[#allocation7 + $0x230] sm:$0xff]
    %v151 = vld [vmem:[#allocation7 + $0x238] sm:$0xff]
    %v152 = vld [vmem:[#allocation7 + $0x240] sm:$0xff]
    %v153 = vld [vmem:[#allocation7 + $0x248] sm:$0xff]
    %v154 = vld [vmem:[#allocation7 + $0x250] sm:$0xff]
    %v155 = vld [vmem:[#allocation7 + $0x258] sm:$0xff]
    %v156 = vld [vmem:[#allocation7 + $0x260] sm:$0xff]
    %v157 = vld [vmem:[#allocation7 + $0x268] sm:$0xff]
    %v158 = vld [vmem:[#allocation7 + $0x270] sm:$0xff]
    %v159 = vld [vmem:[#allocation7 + $0x278] sm:$0xff]
    %v160 = vld [vmem:[#allocation7 + $0x280] sm:$0xff]
    %v161 = vld [vmem:[#allocation7 + $0x288] sm:$0xff]
    %v162 = vld [vmem:[#allocation7 + $0x290] sm:$0xff]
    %v163 = vld [vmem:[#allocation7 + $0x298] sm:$0xff]
    %v164 = vld [vmem:[#allocation7 + $0x2a0] sm:$0xff]
    %v165 = vld [vmem:[#allocation7 + $0x2a8] sm:$0xff]
    %v166 = vld [vmem:[#allocation7 + $0x2b0] sm:$0xff]
    %v167 = vld [vmem:[#allocation7 + $0x2b8] sm:$0xff]
    %v168 = vld [vmem:[#allocation7 + $0x2c0] sm:$0xff]
    %v169 = vld [vmem:[#allocation7 + $0x2c8] sm:$0xff]
    %v170 = vld [vmem:[#allocation7 + $0x2d0] sm:$0xff]
    %v171 = vld [vmem:[#allocation7 + $0x2d8] sm:$0xff]
    %v172 = vld [vmem:[#allocation7 + $0x2e0] sm:$0xff]
    %v173 = vld [vmem:[#allocation7 + $0x2e8] sm:$0xff]
    %v174 = vld [vmem:[#allocation7 + $0x2f0] sm:$0xff]
    %v175 = vld [vmem:[#allocation7 + $0x2f8] sm:$0xff]
    %v176 = vld [vmem:[#allocation7 + $0x300] sm:$0xff]
    %v177 = vld [vmem:[#allocation7 + $0x308] sm:$0xff]
    %v178 = vld [vmem:[#allocation7 + $0x310] sm:$0xff]
    %v179 = vld [vmem:[#allocation7 + $0x318] sm:$0xff]
    %v180 = vld [vmem:[#allocation7 + $0x320] sm:$0xff]
    %v181 = vld [vmem:[#allocation7 + $0x328] sm:$0xff]
    %v182 = vld [vmem:[#allocation7 + $0x330] sm:$0xff]
    %v183 = vld [vmem:[#allocation7 + $0x338] sm:$0xff]
    %v184 = vld [vmem:[#allocation7 + $0x340] sm:$0xff]
    %v185 = vld [vmem:[#allocation7 + $0x348] sm:$0xff]
    %v186 = vld [vmem:[#allocation7 + $0x350] sm:$0xff]
    %v187 = vld [vmem:[#allocation7 + $0x358] sm:$0xff]
    %v188 = vld [vmem:[#allocation7 + $0x360] sm:$0xff]
    %v189 = vld [vmem:[#allocation7 + $0x368] sm:$0xff]
    %v190 = vld [vmem:[#allocation7 + $0x370] sm:$0xff]
    %v191 = vld [vmem:[#allocation7 + $0x378] sm:$0xff]
    %v192 = vld [vmem:[#allocation7 + $0x380] sm:$0xff]
    %v193 = vld [vmem:[#allocation7 + $0x388] sm:$0xff]
    %v194 = vld [vmem:[#allocation7 + $0x390] sm:$0xff]
    %v195 = vld [vmem:[#allocation7 + $0x398] sm:$0xff]
    %v196 = vld [vmem:[#allocation7 + $0x3a0] sm:$0xff]
    %v197 = vld [vmem:[#allocation7 + $0x3a8] sm:$0xff]
    %v198 = vld [vmem:[#allocation7 + $0x3b0] sm:$0xff]
    %v199 = vld [vmem:[#allocation7 + $0x3b8] sm:$0xff]
    %v200 = vld [vmem:[#allocation7 + $0x3c0] sm:$0xff]
    %v201 = vld [vmem:[#allocation7 + $0x3c8] sm:$0xff]
    %v202 = vld [vmem:[#allocation7 + $0x3d0] sm:$0xff]
    %v203 = vld [vmem:[#allocation7 + $0x3d8] sm:$0xff]
    %v204 = vld [vmem:[#allocation7 + $0x3e0] sm:$0xff]
    %v205 = vld [vmem:[#allocation7 + $0x3e8] sm:$0xff]
    %v206 = vld [vmem:[#allocation7 + $0x3f0] sm:$0xff]
    %v207 = vld [vmem:[#allocation7 + $0x3f8] sm:$0xff]
    %v208 = vld [vmem:[#allocation7 + $0x400] sm:$0xff]
    %v209 = vld [vmem:[#allocation7 + $0x408] sm:$0xff]
    %v210 = vld [vmem:[#allocation7 + $0x410] sm:$0xff]
    %v211 = vld [vmem:[#allocation7 + $0x418] sm:$0xff]
    %v212 = vld [vmem:[#allocation7 + $0x420] sm:$0xff]
    %v213 = vld [vmem:[#allocation7 + $0x428] sm:$0xff]
    %v214 = vld [vmem:[#allocation7 + $0x430] sm:$0xff]
    %v215 = vld [vmem:[#allocation7 + $0x438] sm:$0xff]
    %v216 = vld [vmem:[#allocation7 + $0x440] sm:$0xff]
    %v217 = vld [vmem:[#allocation7 + $0x448] sm:$0xff]
    %v218 = vld [vmem:[#allocation7 + $0x450] sm:$0xff]
    %v219 = vld [vmem:[#allocation7 + $0x458] sm:$0xff]
    %v220 = vld [vmem:[#allocation7 + $0x460] sm:$0xff]
    %v221 = vld [vmem:[#allocation7 + $0x468] sm:$0xff]
    %v222 = vld [vmem:[#allocation7 + $0x470] sm:$0xff]
    %v223 = vld [vmem:[#allocation7 + $0x478] sm:$0xff]
    %vm224 = vcmask 523264
    %v226 = vsel %vm224, %v79, 0
    %228 = vmatpush.msra.mxu0 0.0
    %229 = vmatpush.msra.mxu0 0.0
    %230 = vmatpush.msra.mxu0 0.0
    %231 = vmatpush.msra.mxu0 0.0
    %232 = vmatpush.msra.mxu0 0.0
    %233 = vmatpush.msra.mxu0 0.0
    %234 = vmatpush.msra.mxu0 0.0
    %235 = vmatpush.msra.mxu0 0.0
    %236 = vmatpush.msra.mxu0 %v206
    %237 = vmatpush.msra.mxu0 %v188
    %238 = vmatpush.msra.mxu0 %v170
    %239 = vmatpush.msra.mxu0 %v152
    %240 = vmatpush.msra.mxu0 %v134
    %241 = vmatpush.msra.mxu0 %v116
    %242 = vmatpush.msra.mxu0 %v98
    %243 = vmatpush.msra.mxu0 %v80
    %244 = vmatmul.f32.gmra.mxu0 %v226
    %v245 = vpop.f32.mrf.mxu0
    %v246 = vadd.f32 0.0, %v245
    %247 = vdwg.mxu0
    %248 = vmatpush.msra.mxu0 0.0
    %249 = vmatpush.msra.mxu0 0.0
    %250 = vmatpush.msra.mxu0 0.0
    %251 = vmatpush.msra.mxu0 0.0
    %252 = vmatpush.msra.mxu0 0.0
    %253 = vmatpush.msra.mxu0 0.0
    %254 = vmatpush.msra.mxu0 0.0
    %255 = vmatpush.msra.mxu0 0.0
    %256 = vmatpush.msra.mxu0 %v207
    %257 = vmatpush.msra.mxu0 %v189
    %258 = vmatpush.msra.mxu0 %v171
    %259 = vmatpush.msra.mxu0 %v153
    %260 = vmatpush.msra.mxu0 %v135
    %261 = vmatpush.msra.mxu0 %v117
    %262 = vmatpush.msra.mxu0 %v99
    %263 = vmatpush.msra.mxu0 %v81
    %264 = vmatmul.f32.gmra.mxu0 %v226
    %v265 = vpop.f32.mrf.mxu0
    %v266 = vadd.f32 0.0, %v265
    %267 = vdwg.mxu0
    %268 = vmatpush.msra.mxu0 0.0
    %269 = vmatpush.msra.mxu0 0.0
    %270 = vmatpush.msra.mxu0 0.0
    %271 = vmatpush.msra.mxu0 0.0
    %272 = vmatpush.msra.mxu0 0.0
    %273 = vmatpush.msra.mxu0 0.0
    %274 = vmatpush.msra.mxu0 0.0
    %275 = vmatpush.msra.mxu0 0.0
    %276 = vmatpush.msra.mxu0 %v208
    %277 = vmatpush.msra.mxu0 %v190
    %278 = vmatpush.msra.mxu0 %v172
    %279 = vmatpush.msra.mxu0 %v154
    %280 = vmatpush.msra.mxu0 %v136
    %281 = vmatpush.msra.mxu0 %v118
    %282 = vmatpush.msra.mxu0 %v100
    %283 = vmatpush.msra.mxu0 %v82
    %284 = vmatmul.f32.gmra.mxu0 %v226
    %v285 = vpop.f32.mrf.mxu0
    %v286 = vadd.f32 0.0, %v285
    %287 = vdwg.mxu0
    %288 = vmatpush.msra.mxu0 0.0
    %289 = vmatpush.msra.mxu0 0.0
    %290 = vmatpush.msra.mxu0 0.0
    %291 = vmatpush.msra.mxu0 0.0
    %292 = vmatpush.msra.mxu0 0.0
    %293 = vmatpush.msra.mxu0 0.0
    %294 = vmatpush.msra.mxu0 0.0
    %295 = vmatpush.msra.mxu0 0.0
    %296 = vmatpush.msra.mxu0 %v209
    %297 = vmatpush.msra.mxu0 %v191
    %298 = vmatpush.msra.mxu0 %v173
    %299 = vmatpush.msra.mxu0 %v155
    %300 = vmatpush.msra.mxu0 %v137
    %301 = vmatpush.msra.mxu0 %v119
    %302 = vmatpush.msra.mxu0 %v101
    %303 = vmatpush.msra.mxu0 %v83
    %304 = vmatmul.f32.gmra.mxu0 %v226
    %v305 = vpop.f32.mrf.mxu0
    %v306 = vadd.f32 0.0, %v305
    %307 = vdwg.mxu0
    %308 = vmatpush.msra.mxu0 0.0
    %309 = vmatpush.msra.mxu0 0.0
    %310 = vmatpush.msra.mxu0 0.0
    %311 = vmatpush.msra.mxu0 0.0
    %312 = vmatpush.msra.mxu0 0.0
    %313 = vmatpush.msra.mxu0 0.0
    %314 = vmatpush.msra.mxu0 0.0
    %315 = vmatpush.msra.mxu0 0.0
    %316 = vmatpush.msra.mxu0 %v210
    %317 = vmatpush.msra.mxu0 %v192
    %318 = vmatpush.msra.mxu0 %v174
    %319 = vmatpush.msra.mxu0 %v156
    %320 = vmatpush.msra.mxu0 %v138
    %321 = vmatpush.msra.mxu0 %v120
    %322 = vmatpush.msra.mxu0 %v102
    %323 = vmatpush.msra.mxu0 %v84
    %324 = vmatmul.f32.gmra.mxu0 %v226
    %v325 = vpop.f32.mrf.mxu0
    %v326 = vadd.f32 0.0, %v325
    %327 = vdwg.mxu0
    %328 = vmatpush.msra.mxu0 0.0
    %329 = vmatpush.msra.mxu0 0.0
    %330 = vmatpush.msra.mxu0 0.0
    %331 = vmatpush.msra.mxu0 0.0
    %332 = vmatpush.msra.mxu0 0.0
    %333 = vmatpush.msra.mxu0 0.0
    %334 = vmatpush.msra.mxu0 0.0
    %335 = vmatpush.msra.mxu0 0.0
    %336 = vmatpush.msra.mxu0 %v211
    %337 = vmatpush.msra.mxu0 %v193
    %338 = vmatpush.msra.mxu0 %v175
    %339 = vmatpush.msra.mxu0 %v157
    %340 = vmatpush.msra.mxu0 %v139
    %341 = vmatpush.msra.mxu0 %v121
    %342 = vmatpush.msra.mxu0 %v103
    %343 = vmatpush.msra.mxu0 %v85
    %344 = vmatmul.f32.gmra.mxu0 %v226
    %v345 = vpop.f32.mrf.mxu0
    %v346 = vadd.f32 0.0, %v345
    %347 = vdwg.mxu0
    %348 = vmatpush.msra.mxu0 0.0
    %349 = vmatpush.msra.mxu0 0.0
    %350 = vmatpush.msra.mxu0 0.0
    %351 = vmatpush.msra.mxu0 0.0
    %352 = vmatpush.msra.mxu0 0.0
    %353 = vmatpush.msra.mxu0 0.0
    %354 = vmatpush.msra.mxu0 0.0
    %355 = vmatpush.msra.mxu0 0.0
    %356 = vmatpush.msra.mxu0 %v212
    %357 = vmatpush.msra.mxu0 %v194
    %358 = vmatpush.msra.mxu0 %v176
    %359 = vmatpush.msra.mxu0 %v158
    %360 = vmatpush.msra.mxu0 %v140
    %361 = vmatpush.msra.mxu0 %v122
    %362 = vmatpush.msra.mxu0 %v104
    %363 = vmatpush.msra.mxu0 %v86
    %364 = vmatmul.f32.gmra.mxu0 %v226
    %v365 = vpop.f32.mrf.mxu0
    %v366 = vadd.f32 0.0, %v365
    %367 = vdwg.mxu0
    %368 = vmatpush.msra.mxu0 0.0
    %369 = vmatpush.msra.mxu0 0.0
    %370 = vmatpush.msra.mxu0 0.0
    %371 = vmatpush.msra.mxu0 0.0
    %372 = vmatpush.msra.mxu0 0.0
    %373 = vmatpush.msra.mxu0 0.0
    %374 = vmatpush.msra.mxu0 0.0
    %375 = vmatpush.msra.mxu0 0.0
    %376 = vmatpush.msra.mxu0 %v213
    %377 = vmatpush.msra.mxu0 %v195
    %378 = vmatpush.msra.mxu0 %v177
    %379 = vmatpush.msra.mxu0 %v159
    %380 = vmatpush.msra.mxu0 %v141
    %381 = vmatpush.msra.mxu0 %v123
    %382 = vmatpush.msra.mxu0 %v105
    %383 = vmatpush.msra.mxu0 %v87
    %384 = vmatmul.f32.gmra.mxu0 %v226
    %v385 = vpop.f32.mrf.mxu0
    %v386 = vadd.f32 0.0, %v385
    %387 = vdwg.mxu0
    %388 = vmatpush.msra.mxu0 0.0
    %389 = vmatpush.msra.mxu0 0.0
    %390 = vmatpush.msra.mxu0 0.0
    %391 = vmatpush.msra.mxu0 0.0
    %392 = vmatpush.msra.mxu0 0.0
    %393 = vmatpush.msra.mxu0 0.0
    %394 = vmatpush.msra.mxu0 0.0
    %395 = vmatpush.msra.mxu0 0.0
    %396 = vmatpush.msra.mxu0 %v214
    %397 = vmatpush.msra.mxu0 %v196
    %398 = vmatpush.msra.mxu0 %v178
    %399 = vmatpush.msra.mxu0 %v160
    %400 = vmatpush.msra.mxu0 %v142
    %401 = vmatpush.msra.mxu0 %v124
    %402 = vmatpush.msra.mxu0 %v106
    %403 = vmatpush.msra.mxu0 %v88
    %404 = vmatmul.f32.gmra.mxu0 %v226
    %v405 = vpop.f32.mrf.mxu0
    %v406 = vadd.f32 0.0, %v405
    %407 = vdwg.mxu0
    %408 = vmatpush.msra.mxu0 0.0
    %409 = vmatpush.msra.mxu0 0.0
    %410 = vmatpush.msra.mxu0 0.0
    %411 = vmatpush.msra.mxu0 0.0
    %412 = vmatpush.msra.mxu0 0.0
    %413 = vmatpush.msra.mxu0 0.0
    %414 = vmatpush.msra.mxu0 0.0
    %415 = vmatpush.msra.mxu0 0.0
    %416 = vmatpush.msra.mxu0 %v215
    %417 = vmatpush.msra.mxu0 %v197
    %418 = vmatpush.msra.mxu0 %v179
    %419 = vmatpush.msra.mxu0 %v161
    %420 = vmatpush.msra.mxu0 %v143
    %421 = vmatpush.msra.mxu0 %v125
    %422 = vmatpush.msra.mxu0 %v107
    %423 = vmatpush.msra.mxu0 %v89
    %424 = vmatmul.f32.gmra.mxu0 %v226
    %v425 = vpop.f32.mrf.mxu0
    %v426 = vadd.f32 0.0, %v425
    %427 = vdwg.mxu0
    %428 = vmatpush.msra.mxu0 0.0
    %429 = vmatpush.msra.mxu0 0.0
    %430 = vmatpush.msra.mxu0 0.0
    %431 = vmatpush.msra.mxu0 0.0
    %432 = vmatpush.msra.mxu0 0.0
    %433 = vmatpush.msra.mxu0 0.0
    %434 = vmatpush.msra.mxu0 0.0
    %435 = vmatpush.msra.mxu0 0.0
    %436 = vmatpush.msra.mxu0 %v216
    %437 = vmatpush.msra.mxu0 %v198
    %438 = vmatpush.msra.mxu0 %v180
    %439 = vmatpush.msra.mxu0 %v162
    %440 = vmatpush.msra.mxu0 %v144
    %441 = vmatpush.msra.mxu0 %v126
    %442 = vmatpush.msra.mxu0 %v108
    %443 = vmatpush.msra.mxu0 %v90
    %444 = vmatmul.f32.gmra.mxu0 %v226
    %v445 = vpop.f32.mrf.mxu0
    %v446 = vadd.f32 0.0, %v445
    %447 = vdwg.mxu0
    %448 = vmatpush.msra.mxu0 0.0
    %449 = vmatpush.msra.mxu0 0.0
    %450 = vmatpush.msra.mxu0 0.0
    %451 = vmatpush.msra.mxu0 0.0
    %452 = vmatpush.msra.mxu0 0.0
    %453 = vmatpush.msra.mxu0 0.0
    %454 = vmatpush.msra.mxu0 0.0
    %455 = vmatpush.msra.mxu0 0.0
    %456 = vmatpush.msra.mxu0 %v217
    %457 = vmatpush.msra.mxu0 %v199
    %458 = vmatpush.msra.mxu0 %v181
    %459 = vmatpush.msra.mxu0 %v163
    %460 = vmatpush.msra.mxu0 %v145
    %461 = vmatpush.msra.mxu0 %v127
    %462 = vmatpush.msra.mxu0 %v109
    %463 = vmatpush.msra.mxu0 %v91
    %464 = vmatmul.f32.gmra.mxu0 %v226
    %v465 = vpop.f32.mrf.mxu0
    %v466 = vadd.f32 0.0, %v465
    %467 = vdwg.mxu0
    %468 = vmatpush.msra.mxu0 0.0
    %469 = vmatpush.msra.mxu0 0.0
    %470 = vmatpush.msra.mxu0 0.0
    %471 = vmatpush.msra.mxu0 0.0
    %472 = vmatpush.msra.mxu0 0.0
    %473 = vmatpush.msra.mxu0 0.0
    %474 = vmatpush.msra.mxu0 0.0
    %475 = vmatpush.msra.mxu0 0.0
    %476 = vmatpush.msra.mxu0 %v218
    %477 = vmatpush.msra.mxu0 %v200
    %478 = vmatpush.msra.mxu0 %v182
    %479 = vmatpush.msra.mxu0 %v164
    %480 = vmatpush.msra.mxu0 %v146
    %481 = vmatpush.msra.mxu0 %v128
    %482 = vmatpush.msra.mxu0 %v110
    %483 = vmatpush.msra.mxu0 %v92
    %484 = vmatmul.f32.gmra.mxu0 %v226
    %v485 = vpop.f32.mrf.mxu0
    %v486 = vadd.f32 0.0, %v485
    %487 = vdwg.mxu0
    %488 = vmatpush.msra.mxu0 0.0
    %489 = vmatpush.msra.mxu0 0.0
    %490 = vmatpush.msra.mxu0 0.0
    %491 = vmatpush.msra.mxu0 0.0
    %492 = vmatpush.msra.mxu0 0.0
    %493 = vmatpush.msra.mxu0 0.0
    %494 = vmatpush.msra.mxu0 0.0
    %495 = vmatpush.msra.mxu0 0.0
    %496 = vmatpush.msra.mxu0 %v219
    %497 = vmatpush.msra.mxu0 %v201
    %498 = vmatpush.msra.mxu0 %v183
    %499 = vmatpush.msra.mxu0 %v165
    %500 = vmatpush.msra.mxu0 %v147
    %501 = vmatpush.msra.mxu0 %v129
    %502 = vmatpush.msra.mxu0 %v111
    %503 = vmatpush.msra.mxu0 %v93
    %504 = vmatmul.f32.gmra.mxu0 %v226
    %v505 = vpop.f32.mrf.mxu0
    %v506 = vadd.f32 0.0, %v505
    %507 = vdwg.mxu0
    %508 = vmatpush.msra.mxu0 0.0
    %509 = vmatpush.msra.mxu0 0.0
    %510 = vmatpush.msra.mxu0 0.0
    %511 = vmatpush.msra.mxu0 0.0
    %512 = vmatpush.msra.mxu0 0.0
    %513 = vmatpush.msra.mxu0 0.0
    %514 = vmatpush.msra.mxu0 0.0
    %515 = vmatpush.msra.mxu0 0.0
    %516 = vmatpush.msra.mxu0 %v220
    %517 = vmatpush.msra.mxu0 %v202
    %518 = vmatpush.msra.mxu0 %v184
    %519 = vmatpush.msra.mxu0 %v166
    %520 = vmatpush.msra.mxu0 %v148
    %521 = vmatpush.msra.mxu0 %v130
    %522 = vmatpush.msra.mxu0 %v112
    %523 = vmatpush.msra.mxu0 %v94
    %524 = vmatmul.f32.gmra.mxu0 %v226
    %v525 = vpop.f32.mrf.mxu0
    %v526 = vadd.f32 0.0, %v525
    %527 = vdwg.mxu0
    %528 = vmatpush.msra.mxu0 0.0
    %529 = vmatpush.msra.mxu0 0.0
    %530 = vmatpush.msra.mxu0 0.0
    %531 = vmatpush.msra.mxu0 0.0
    %532 = vmatpush.msra.mxu0 0.0
    %533 = vmatpush.msra.mxu0 0.0
    %534 = vmatpush.msra.mxu0 0.0
    %535 = vmatpush.msra.mxu0 0.0
    %536 = vmatpush.msra.mxu0 %v221
    %537 = vmatpush.msra.mxu0 %v203
    %538 = vmatpush.msra.mxu0 %v185
    %539 = vmatpush.msra.mxu0 %v167
    %540 = vmatpush.msra.mxu0 %v149
    %541 = vmatpush.msra.mxu0 %v131
    %542 = vmatpush.msra.mxu0 %v113
    %543 = vmatpush.msra.mxu0 %v95
    %544 = vmatmul.f32.gmra.mxu0 %v226
    %v545 = vpop.f32.mrf.mxu0
    %v546 = vadd.f32 0.0, %v545
    %547 = vdwg.mxu0
    %548 = vmatpush.msra.mxu0 0.0
    %549 = vmatpush.msra.mxu0 0.0
    %550 = vmatpush.msra.mxu0 0.0
    %551 = vmatpush.msra.mxu0 0.0
    %552 = vmatpush.msra.mxu0 0.0
    %553 = vmatpush.msra.mxu0 0.0
    %554 = vmatpush.msra.mxu0 0.0
    %555 = vmatpush.msra.mxu0 0.0
    %556 = vmatpush.msra.mxu0 %v222
    %557 = vmatpush.msra.mxu0 %v204
    %558 = vmatpush.msra.mxu0 %v186
    %559 = vmatpush.msra.mxu0 %v168
    %560 = vmatpush.msra.mxu0 %v150
    %561 = vmatpush.msra.mxu0 %v132
    %562 = vmatpush.msra.mxu0 %v114
    %563 = vmatpush.msra.mxu0 %v96
    %564 = vmatmul.f32.gmra.mxu0 %v226
    %v565 = vpop.f32.mrf.mxu0
    %v566 = vadd.f32 0.0, %v565
    %567 = vdwg.mxu0
    %568 = vmatpush.msra.mxu0 0.0
    %569 = vmatpush.msra.mxu0 0.0
    %570 = vmatpush.msra.mxu0 0.0
    %571 = vmatpush.msra.mxu0 0.0
    %572 = vmatpush.msra.mxu0 0.0
    %573 = vmatpush.msra.mxu0 0.0
    %574 = vmatpush.msra.mxu0 0.0
    %575 = vmatpush.msra.mxu0 0.0
    %576 = vmatpush.msra.mxu0 %v223
    %577 = vmatpush.msra.mxu0 %v205
    %578 = vmatpush.msra.mxu0 %v187
    %579 = vmatpush.msra.mxu0 %v169
    %580 = vmatpush.msra.mxu0 %v151
    %581 = vmatpush.msra.mxu0 %v133
    %582 = vmatpush.msra.mxu0 %v115
    %583 = vmatpush.msra.mxu0 %v97
    %584 = vmatmul.f32.gmra.mxu0 %v226
    %v585 = vpop.f32.mrf.mxu0
    %v586 = vadd.f32 0.0, %v585
    %587 = vdwg.mxu0
    %v588 = vld [vmem:[#allocation2] sm:$0xff]
    %v589 = vld [vmem:[#allocation2 + $0x8] sm:$0xff]
    %vm590 = vcmask 588800
    %v592 = vsel %vm590, %v588, 0
    %v595 = vsel %vm590, %v589, 0
    %597 = vmatpush.msra.mxu0 0.0
    %598 = vmatpush.msra.mxu0 0.0
    %599 = vmatpush.msra.mxu0 0.0
    %600 = vmatpush.msra.mxu0 0.0
    %601 = vmatpush.msra.mxu0 0.0
    %602 = vmatpush.msra.mxu0 0.0
    %603 = vmatpush.msra.mxu0 0.0
    %604 = vmatpush.msra.mxu0 %v566
    %605 = vmatpush.msra.mxu0 %v526
    %606 = vmatpush.msra.mxu0 %v486
    %607 = vmatpush.msra.mxu0 %v446
    %608 = vmatpush.msra.mxu0 %v406
    %609 = vmatpush.msra.mxu0 %v366
    %610 = vmatpush.msra.mxu0 %v326
    %611 = vmatpush.msra.mxu0 %v286
    %612 = vmatpush.msra.mxu0 %v246
    %613 = vmatmul.f32.gmra.mxu0 %v592
    %v614 = vpop.f32.mrf.mxu0
    %v615 = vadd.f32 0.0, %v614
    %616 = vmatmul.f32.gmra.mxu0 %v595
    %v617 = vpop.f32.mrf.mxu0
    %v618 = vadd.f32 0.0, %v617
    %619 = vdwg.mxu0
    %620 = vmatpush.msra.mxu0 0.0
    %621 = vmatpush.msra.mxu0 0.0
    %622 = vmatpush.msra.mxu0 0.0
    %623 = vmatpush.msra.mxu0 0.0
    %624 = vmatpush.msra.mxu0 0.0
    %625 = vmatpush.msra.mxu0 0.0
    %626 = vmatpush.msra.mxu0 0.0
    %627 = vmatpush.msra.mxu0 %v586
    %628 = vmatpush.msra.mxu0 %v546
    %629 = vmatpush.msra.mxu0 %v506
    %630 = vmatpush.msra.mxu0 %v466
    %631 = vmatpush.msra.mxu0 %v426
    %632 = vmatpush.msra.mxu0 %v386
    %633 = vmatpush.msra.mxu0 %v346
    %634 = vmatpush.msra.mxu0 %v306
    %635 = vmatpush.msra.mxu0 %v266
    %636 = vmatmul.f32.gmra.mxu0 %v592
    %v637 = vpop.f32.mrf.mxu0
    %v638 = vadd.f32 0.0, %v637
    %639 = vmatmul.f32.gmra.mxu0 %v595
    %v640 = vpop.f32.mrf.mxu0
    %v641 = vadd.f32 0.0, %v640
    %642 = vdwg.mxu0
    %v643 = vadd.f32 %v615, %v638
    %644 = vadd.xlane.f32.xlu0 %v643
    %v645 = vpop.xlane.xlu0 %644
    %v646 = vadd.f32 %v618, %v641
    %647 = vadd.xlane.f32.xlu0 %v646
    %v648 = vpop.xlane.xlu0 %647
    %v649 = vmul.f32 %v645, 0.00390625
    %v650 = vmul.f32 %v648, 0.00390625
    %v651 = vmul.f32 %v615, %v615
    %v652 = vmul.f32 %v638, %v638
    %v653 = vmul.f32 %v618, %v618
    %v654 = vmul.f32 %v641, %v641
    %v655 = vadd.f32 %v651, %v652
    %656 = vadd.xlane.f32.xlu0 %v655
    %v657 = vpop.xlane.xlu0 %656
    %v658 = vadd.f32 %v653, %v654
    %659 = vadd.xlane.f32.xlu0 %v658
    %v660 = vpop.xlane.xlu0 %659
    %v661 = vmul.f32 %v657, 0.00390625
    %v662 = vmul.f32 %v660, 0.00390625
    %v663 = vmul.f32 %v649, %v649
    %v664 = vmul.f32 %v650, %v650
    %v665 = vsub.f32 %v661, %v663
    %v666 = vsub.f32 %v662, %v664
    %v667 = vmax.f32 %v665, 0.0
    %v668 = vmax.f32 %v666, 0.0
    %v669 = vsub.f32 %v615, %v649
    %v670 = vsub.f32 %v638, %v649
    %v671 = vsub.f32 %v618, %v650
    %v672 = vsub.f32 %v641, %v650
    %v673 = vadd.f32 %v667, 1e-05
    %v674 = vadd.f32 %v668, 1e-05
    %v675 = vrsqrt.pop %v673
    %v676 = vmul.f32 %v675, %v673
    %v677 = vmul.f32 %v676, %v675
    %v678 = vmul.f32 0.5, %v677
    %v679 = vsub.f32 1.5, %v678
    %v680 = vmul.f32 %v675, %v679
    %vm681 = vweird.f32 %v673
    %vm682 = vweird.f32 %v675
    %vm683 = vmor %vm681, %vm682
    %v684 = vsel %vm683, %v675, %v680
    %v685 = vrsqrt.pop %v674
    %v686 = vmul.f32 %v685, %v674
    %v687 = vmul.f32 %v686, %v685
    %v688 = vmul.f32 0.5, %v687
    %v689 = vsub.f32 1.5, %v688
    %v690 = vmul.f32 %v685, %v689
    %vm691 = vweird.f32 %v674
    %vm692 = vweird.f32 %v685
    %vm693 = vmor %vm691, %vm692
    %v694 = vsel %vm693, %v685, %v690
    %v695 = vmul.f32 %v669, %v684
    %v696 = vmul.f32 %v670, %v684
    %v697 = vmul.f32 %v671, %v694
    %v698 = vmul.f32 %v672, %v694
    %v699 = vmax.f32 %v695, 0.0
    %v700 = vmax.f32 %v696, 0.0
    %v701 = vmax.f32 %v697, 0.0
    %v702 = vmax.f32 %v698, 0.0
    %703 = vst [vmem:[#allocation10] sm:$0xff] %v699
    %704 = vst [vmem:[#allocation10 + $0x8] sm:$0xff] %v700
    %v705 = vld [vmem:[#allocation8] sm:$0xff]
    %v706 = vld [vmem:[#allocation8 + $0x8] sm:$0xff]
    %707 = vst [vmem:[#allocation10 + $0x10] sm:$0xff] %v705
    %708 = vst [vmem:[#allocation10 + $0x18] sm:$0xff] %v706
    %s709 = scalar_lea.vmem [#allocation10], 32
    %710 = vst [vmem:[%s709] sm:$0xff] %v701
    %711 = vst [vmem:[%s709 + $0x8] sm:$0xff] %v702
    %s712 = scalar_lea.vmem [#allocation8], 16
    %v713 = vld [vmem:[%s712] sm:$0xff]
    %v714 = vld [vmem:[%s712 + $0x8] sm:$0xff]
    %715 = vst [vmem:[%s709 + $0x10] sm:$0xff] %v713
    %716 = vst [vmem:[%s709 + $0x18] sm:$0xff] %v714
    // Predicated region
    $region34: #{tpu_custom_call.1} parent=1 // pred_check
      _
    $region35: #{tpu_custom_call.1} parent=1 // pred_check_branch
      %718 = sbr.rel (0) target = $region37
    $region36: #{tpu_custom_call.1} parent=1 // pred_region
      %720 = vsyncadd [#allocation4], 0
      %s721 = sshll.u32 [#allocation10], 4
      %s722 = int_to_ptr.vmem [resolvable:$true] %s721
      %s723 = sshll.u32 %s4, 4
      %s724 = int_to_ptr.hbm [resolvable:$true] %s723
      %729 = dma.vmem_to_hbm [thread:$0]  %s722, 1024, %s724, [#allocation4], 256, 256, 16
    $region37: #{tpu_custom_call.1} parent=1 // pred_fallthru
      _
    // Predicated region
    $region38: #{tpu_custom_call.1} parent=1 // pred_check
      _
    $region39: #{tpu_custom_call.1} parent=1 // pred_check_branch
      %731 = sbr.rel (0) target = $region41
    $region40: #{tpu_custom_call.1} parent=1 // pred_region
      %733 = dma.done [#allocation4], 1024
    $region41: #{tpu_custom_call.1} parent=1 // pred_fallthru
      _
    %734 = vsyncpa [#allocation3], 1
    %735 = vsyncpa [#allocation6], 1
    %736 = vsyncpa [#allocation9], 1
    %737 = vsyncpa [#allocation4], 1

</llo_original>
